<compile_context>
chip_gen: v6e
topology: v6e:2x2x1
jax: 0.10.0
libtpu: 0.0.40
codegen_flags: <defaults>
</compile_context>

<pallas_src>
import jax
import jax.numpy as jnp
from jax.experimental import pallas as pl
from jax.experimental.pallas import tpu as pltpu


def _make_channel_attention_kernel(hw, t_hw, b_t, needs_mask):
    """Builds the kernel closure for a given logical HW / tile geometry."""
    inv_hw = 1.0 / float(hw)

    def kernel(x_ref, w1t_ref, w2t_ref, o_ref, sum_acc, max_acc):
        # x_ref: (b_t, C, t_hw)  w1t_ref: (C, Cr)  w2t_ref: (Cr, C)
        # o_ref: (b_t, C)        sum_acc/max_acc: (b_t, C) VMEM scratch
        h = pl.program_id(1)

        @pl.when(h == 0)
        def _init():
            sum_acc[...] = jnp.zeros_like(sum_acc)
            max_acc[...] = jnp.full_like(max_acc, -jnp.inf)

        x = x_ref[...]                                   # (b_t, C, t_hw) f32

        if needs_mask:
            # Padded lanes: already zero for the sum; mask to -inf for the max.
            lane = jax.lax.broadcasted_iota(jnp.int32, x.shape, 2)
            valid = (h * t_hw + lane) < hw
            x_for_max = jnp.where(valid, x, -jnp.inf)
        else:
            x_for_max = x

        sum_acc[...] += jnp.sum(x, axis=-1)                        # (b_t, C)
        max_acc[...] = jnp.maximum(max_acc[...],
                                   jnp.max(x_for_max, axis=-1))    # (b_t, C)

        @pl.when(h == pl.num_programs(1) - 1)
        def _finalize():
            avg_p = sum_acc[...] * jnp.float32(inv_hw)             # (b_t, C)
            max_p = max_acc[...]                                   # (b_t, C)
            # Fuse both pooling branches into one pair of matmuls.
            p = jnp.concatenate([avg_p, max_p], axis=0)            # (2*b_t, C)
            hmid = jnp.dot(p, w1t_ref[...],
                           preferred_element_type=jnp.float32)     # (2*b_t, Cr)
            hmid = jnp.maximum(hmid, 0.0)                          # ReLU
            y = jnp.dot(hmid, w2t_ref[...],
                        preferred_element_type=jnp.float32)        # (2*b_t, C)
            o_ref[...] = jax.nn.sigmoid(y[:b_t] + y[b_t:])

    return kernel


def channel_attention(x, w1, w2, *, t_hw=None, b_t=None):
    """x: (B, C, H, W) f32; w1: (C//r, C); w2: (C, C//r). Returns (B, C, 1, 1)."""
    B, C, H, W = x.shape
    Cr = w1.shape[0]
    HW = H * W

    # ---- batch tile: whole batch, or 8-row blocks when evenly divisible.
    if b_t is None:
        b_t = 8 if (B > 8 and B % 8 == 0) else B

    # ---- HW tile: multiple of 128 lanes, single input block <= ~4 MiB f32
    # (keeps 2x double-buffered input well inside v7x's 64 MiB VMEM too).
    hw_pad128 = pl.cdiv(HW, 128) * 128
    if t_hw is None:
        budget = 4 * 1024 * 1024
        t_hw = max(128, (budget // (b_t * C * 4)) // 128 * 128)
    t_hw = min(t_hw, hw_pad128)
    n_hw_tiles = pl.cdiv(hw_pad128, t_hw)
    t_hw = pl.cdiv(pl.cdiv(hw_pad128, n_hw_tiles), 128) * 128  # balance tiles
    hw_pad = n_hw_tiles * t_hw

    x_flat = x.reshape(B, C, HW)
    if hw_pad != HW:
        x_flat = jnp.pad(x_flat, ((0, 0), (0, 0), (0, hw_pad - HW)))

    # Pre-transpose weights once in the wrapper -> no in-kernel transposes.
    w1t = jnp.transpose(w1)   # (C, Cr)
    w2t = jnp.transpose(w2)   # (Cr, C)

    nb = B // b_t

    kernel = _make_channel_attention_kernel(HW, t_hw, b_t,
                                            needs_mask=(hw_pad != HW))

    x_block_bytes = b_t * C * t_hw * 4
    vmem_limit = int(min(max(4 * x_block_bytes + (2 << 20), 16 << 20), 64 << 20))

    out = pl.pallas_call(
        kernel,
        out_shape=jax.ShapeDtypeStruct((B, C), jnp.float32),
        grid_spec=pltpu.PrefetchScalarGridSpec(
            num_scalar_prefetch=0,
            grid=(nb, n_hw_tiles),
            in_specs=[
                pl.BlockSpec((b_t, C, t_hw), lambda b, h: (b, 0, h)),
                pl.BlockSpec((C, Cr), lambda b, h: (0, 0)),
                pl.BlockSpec((Cr, C), lambda b, h: (0, 0)),
            ],
            out_specs=pl.BlockSpec((b_t, C), lambda b, h: (b, 0)),
            scratch_shapes=[
                pltpu.VMEM((b_t, C), jnp.float32),   # running sum
                pltpu.VMEM((b_t, C), jnp.float32),   # running max
            ],
        ),
        compiler_params=pltpu.CompilerParams(
            dimension_semantics=("parallel", "arbitrary"),
            vmem_limit_bytes=vmem_limit,
        ),
    )(x_flat, w1t, w2t)

    return out.reshape(B, C, 1, 1)


def _reference(x, w1, w2):
    # Pure-JAX reference mirroring the PyTorch forward.
    avg = jnp.mean(x, axis=(2, 3))           # (B, C)
    mx = jnp.max(x, axis=(2, 3))             # (B, C)

    def fc(p):
        h = jnp.maximum(p @ w1.T, 0.0)
        return h @ w2.T

    return jax.nn.sigmoid(fc(avg) + fc(mx))[:, :, None, None]


if __name__ == "__main__":
    # Small shapes consistent with the module: in_planes=64, ratio=16 -> hidden=4.
    B, C, H, W = 2, 64, 16, 16
    RATIO = 16
    Cr = C // RATIO

    key = jax.random.PRNGKey(0)
    kx, k1, k2, kx2 = jax.random.split(key, 4)

    x = jax.random.normal(kx, (B, C, H, W), dtype=jnp.float32)
    # Deterministic synthetic weights (Conv2d(C,Cr,1) / Conv2d(Cr,C,1), no bias).
    w1 = jax.random.normal(k1, (Cr, C), dtype=jnp.float32) * 0.1
    w2 = jax.random.normal(k2, (C, Cr), dtype=jnp.float32) * 0.1

    # Force two HW tiles (t_hw=128) so the multi-step accumulation + finalize
    # path is exercised even at this small spatial size.
    out = channel_attention(x, w1, w2, t_hw=128)
    out = jax.block_until_ready(out)
    ref = _reference(x, w1, w2)
    assert out.shape == (B, C, 1, 1), out.shape
    assert jnp.allclose(out, ref, atol=1e-5, rtol=1e-5), "mismatch vs reference"

    # Non-128-divisible spatial extent exercises the padded-lane mask path.
    x2 = jax.random.normal(kx2, (B, C, 15, 15), dtype=jnp.float32)
    out2 = jax.block_until_ready(channel_attention(x2, w1, w2, t_hw=128))
    ref2 = _reference(x2, w1, w2)
    assert jnp.allclose(out2, ref2, atol=1e-5, rtol=1e-5), "mismatch vs reference (padded)"

    print("KERNEL_OK")
</pallas_src>

<mosaic_0001>
module attributes {stable_mosaic.version = 11 : i64} {
  func.func @kernel(%arg0: i32, %arg1: i32, %arg2: memref<2x64x128xf32, #tpu.memory_space<vmem>>, %arg3: memref<64x4xf32, #tpu.memory_space<vmem>>, %arg4: memref<4x64xf32, #tpu.memory_space<vmem>>, %arg5: memref<2x64xf32, #tpu.memory_space<vmem>>, %arg6: memref<2x64xf32, #tpu.memory_space<vmem>>, %arg7: memref<2x64xf32, #tpu.memory_space<vmem>>) attributes {dimension_semantics = [#tpu.dimension_semantics<parallel>, #tpu.dimension_semantics<arbitrary>], iteration_bounds = array<i64: 1, 2>, scalar_prefetch = 0 : i64, scratch_operands = 2 : i64, tpu.core_type = #tpu.core_type<tc>, window_params = [{transform_indices = @transform_0, window_bounds = array<i64: 2, 64, 128>}, {pipeline_mode = #tpu.pipeline_mode<synchronous>, transform_indices = @transform_1, window_bounds = array<i64: 64, 4>}, {pipeline_mode = #tpu.pipeline_mode<synchronous>, transform_indices = @transform_2, window_bounds = array<i64: 4, 64>}, {transform_indices = @transform_3, window_bounds = array<i64: 2, 64>}]} {
    %c0_i32 = arith.constant 0 : i32
    %0 = arith.cmpi eq, %arg1, %c0_i32 : i32
    %1 = arith.extui %0 : i1 to i32
    %c0_i32_0 = arith.constant 0 : i32
    %2 = arith.cmpi ne, %1, %c0_i32_0 : i32
    scf.if %2 {
      %cst_13 = arith.constant 0.000000e+00 : f32
      %15 = vector.broadcast %cst_13 : f32 to vector<2x64xf32>
      %c0_14 = arith.constant 0 : index
      %c0_15 = arith.constant 0 : index
      %16 = vector.load %arg6[%c0_14, %c0_15] : memref<2x64xf32, #tpu.memory_space<vmem>>, vector<2x64xf32>
      tpu.vector_store %arg6[%c0_14, %c0_15], %15 {strides = array<i32>} : memref<2x64xf32, #tpu.memory_space<vmem>>, vector<2x64xf32>,
      %cst_16 = arith.constant 0xFF800000 : f32
      %17 = vector.broadcast %cst_16 : f32 to vector<2x64xf32>
      %c0_17 = arith.constant 0 : index
      %c0_18 = arith.constant 0 : index
      %18 = vector.load %arg7[%c0_17, %c0_18] : memref<2x64xf32, #tpu.memory_space<vmem>>, vector<2x64xf32>
      tpu.vector_store %arg7[%c0_17, %c0_18], %17 {strides = array<i32>} : memref<2x64xf32, #tpu.memory_space<vmem>>, vector<2x64xf32>,
    } else {
    }
    %c0 = arith.constant 0 : index
    %c0_1 = arith.constant 0 : index
    %c0_2 = arith.constant 0 : index
    %3 = vector.load %arg2[%c0, %c0_1, %c0_2] : memref<2x64x128xf32, #tpu.memory_space<vmem>>, vector<2x64x128xf32>
    %c0_3 = arith.constant 0 : index
    %c0_4 = arith.constant 0 : index
    %4 = vector.load %arg6[%c0_3, %c0_4] : memref<2x64xf32, #tpu.memory_space<vmem>>, vector<2x64xf32>
    %cst = arith.constant dense<0.000000e+00> : vector<2x64xf32>
    %5 = vector.multi_reduction <add>, %3, %cst [2] : vector<2x64x128xf32> to vector<2x64xf32>
    %6 = arith.addf %4, %5 : vector<2x64xf32>
    %c0_5 = arith.constant 0 : index
    %c0_6 = arith.constant 0 : index
    %7 = vector.load %arg6[%c0_5, %c0_6] : memref<2x64xf32, #tpu.memory_space<vmem>>, vector<2x64xf32>
    tpu.vector_store %arg6[%c0_5, %c0_6], %6 {strides = array<i32>} : memref<2x64xf32, #tpu.memory_space<vmem>>, vector<2x64xf32>,
    %c0_7 = arith.constant 0 : index
    %c0_8 = arith.constant 0 : index
    %8 = vector.load %arg7[%c0_7, %c0_8] : memref<2x64xf32, #tpu.memory_space<vmem>>, vector<2x64xf32>
    %cst_9 = arith.constant dense<0xFF800000> : vector<2x64xf32>
    %9 = vector.multi_reduction <maximumf>, %3, %cst_9 [2] : vector<2x64x128xf32> to vector<2x64xf32>
    %10 = arith.maximumf %8, %9 : vector<2x64xf32>
    %c0_10 = arith.constant 0 : index
    %c0_11 = arith.constant 0 : index
    %11 = vector.load %arg7[%c0_10, %c0_11] : memref<2x64xf32, #tpu.memory_space<vmem>>, vector<2x64xf32>
    tpu.vector_store %arg7[%c0_10, %c0_11], %10 {strides = array<i32>} : memref<2x64xf32, #tpu.memory_space<vmem>>, vector<2x64xf32>,
    %c1_i32 = arith.constant 1 : i32
    %12 = arith.cmpi eq, %arg1, %c1_i32 : i32
    %13 = arith.extui %12 : i1 to i32
    %c0_i32_12 = arith.constant 0 : i32
    %14 = arith.cmpi ne, %13, %c0_i32_12 : i32
    scf.if %14 {
      %c0_13 = arith.constant 0 : index
      %c0_14 = arith.constant 0 : index
      %15 = vector.load %arg6[%c0_13, %c0_14] : memref<2x64xf32, #tpu.memory_space<vmem>>, vector<2x64xf32>
      %cst_15 = arith.constant 3.906250e-03 : f32
      %16 = vector.broadcast %cst_15 : f32 to vector<2x64xf32>
      %17 = arith.mulf %15, %16 : vector<2x64xf32>
      %c0_16 = arith.constant 0 : index
      %c0_17 = arith.constant 0 : index
      %18 = vector.load %arg7[%c0_16, %c0_17] : memref<2x64xf32, #tpu.memory_space<vmem>>, vector<2x64xf32>
      %19 = tpu.concatenate %17, %18 in 0 : vector<2x64xf32>, vector<2x64xf32> -> vector<4x64xf32>
      %c0_18 = arith.constant 0 : index
      %c0_19 = arith.constant 0 : index
      %20 = vector.load %arg3[%c0_18, %c0_19] : memref<64x4xf32, #tpu.memory_space<vmem>>, vector<64x4xf32>
      %cst_20 = arith.constant dense<0.000000e+00> : vector<4x4xf32>
      %21 = tpu.matmul %19, %20, %cst_20 {dimension_numbers = #tpu.dot_dimension_numbers<[1], [0], [0], [1], [0, 0, 1, 1], [], []>} : vector<4x64xf32>, vector<64x4xf32>, vector<4x4xf32> -> vector<4x4xf32>
      %cst_21 = arith.constant 0.000000e+00 : f32
      %22 = vector.broadcast %cst_21 : f32 to vector<4x4xf32>
      %23 = arith.maximumf %21, %22 : vector<4x4xf32>
      %c0_22 = arith.constant 0 : index
      %c0_23 = arith.constant 0 : index
      %24 = vector.load %arg4[%c0_22, %c0_23] : memref<4x64xf32, #tpu.memory_space<vmem>>, vector<4x64xf32>
      %cst_24 = arith.constant dense<0.000000e+00> : vector<4x64xf32>
      %25 = tpu.matmul %23, %24, %cst_24 {dimension_numbers = #tpu.dot_dimension_numbers<[1], [0], [0], [1], [0, 0, 1, 1], [], []>} : vector<4x4xf32>, vector<4x64xf32>, vector<4x64xf32> -> vector<4x64xf32>
      %26 = vector.extract_strided_slice %25 {offsets = [0, 0], sizes = [2, 64], strides = [1, 1]} : vector<4x64xf32> to vector<2x64xf32>
      %27 = vector.extract_strided_slice %25 {offsets = [2, 0], sizes = [2, 64], strides = [1, 1]} : vector<4x64xf32> to vector<2x64xf32>
      %28 = arith.addf %26, %27 : vector<2x64xf32>
      %29 = arith.negf %28 : vector<2x64xf32>
      %30 = math.exp %29 : vector<2x64xf32>
      %cst_25 = arith.constant 1.000000e+00 : f32
      %31 = vector.broadcast %cst_25 : f32 to vector<2x64xf32>
      %32 = arith.addf %31, %30 : vector<2x64xf32>
      %33 = arith.divf %31, %32 : vector<2x64xf32>
      %c0_26 = arith.constant 0 : index
      %c0_27 = arith.constant 0 : index
      %34 = vector.load %arg5[%c0_26, %c0_27] : memref<2x64xf32, #tpu.memory_space<vmem>>, vector<2x64xf32>
      tpu.vector_store %arg5[%c0_26, %c0_27], %33 {strides = array<i32>} : memref<2x64xf32, #tpu.memory_space<vmem>>, vector<2x64xf32>,
    } else {
    }
    return
  }
  func.func @transform_0(%arg0: i32, %arg1: i32) -> (i32, i32, i32) {
    %c0_i32 = arith.constant 0 : i32
    %c0_i32_0 = arith.constant 0 : i32
    return %arg0, %c0_i32, %arg1 : i32, i32, i32
  }
  func.func @transform_1(%arg0: i32, %arg1: i32) -> (i32, i32) {
    %c0_i32 = arith.constant 0 : i32
    %c0_i32_0 = arith.constant 0 : i32
    %c0_i32_1 = arith.constant 0 : i32
    return %c0_i32, %c0_i32_0 : i32, i32
  }
  func.func @transform_2(%arg0: i32, %arg1: i32) -> (i32, i32) {
    %c0_i32 = arith.constant 0 : i32
    %c0_i32_0 = arith.constant 0 : i32
    %c0_i32_1 = arith.constant 0 : i32
    return %c0_i32, %c0_i32_0 : i32, i32
  }
  func.func @transform_3(%arg0: i32, %arg1: i32) -> (i32, i32) {
    %c0_i32 = arith.constant 0 : i32
    %c0_i32_0 = arith.constant 0 : i32
    return %arg0, %c0_i32 : i32, i32
  }
}

</mosaic_0001>

<llo_original>
// kernel: tpu_custom_call.1
$region0: #{tpu_custom_call.1}
  #allocation0 [shape = 'u32[]', space=smem, size = 0x4, offset = 0x4, fixed_abs, tag = 'smem constant byte address 0x4 - core index']
  #allocation1 [shape = 'u32[144,128]{1,0:T(1,128)}', space=vmem, size = 0x12000, scoped, tag = 'internal scratch']
  #allocation2 [shape = 'f32[2,64]{1,0:T(2,128)}', space=vmem, size = 0x400, scoped, tag = 'scratch operand']
  #allocation3 [shape = 'f32[2,64]{1,0:T(2,128)}', space=vmem, size = 0x400, scoped, tag = 'scratch operand']
  %s0 = inlined_call_operand.hbm [shape: f32[2,64,256], index: 0, kind: input, shape index: {}]
  %s1 = inlined_call_operand.vmem [shape: f32[64,4], index: 1, kind: input, shape index: {}]
  %s2 = inlined_call_operand.vmem [shape: f32[4,64], index: 2, kind: input, shape index: {}]
  %s3 = inlined_call_operand.hbm [shape: f32[2,64], index: 3, kind: output, shape index: {}]
  %s4 = sld [smem:[#allocation0]]
  $region57: #{tpu_custom_call.1} parent=0
    _
  %s6 = ssub.s32 1, %s4
  %s7 = scalar_select 0, %s6, %s4
  $region1: #{tpu_custom_call.1} parent=0
    #allocation4 [shape = 'u8[131072]{0}', space=vmem, size = 0x20000, scoped, tag = 'input window, operand 0']
    #allocation5 [shape = 's32[2]{0}', space=sflag, size = 0x8, scoped, tag = 'scoped memory for tpu_custom_call.1']
    #allocation6 [shape = 's32[2]{0}', space=sflag, size = 0x8, scoped, tag = 'scoped memory for tpu_custom_call.1']
    #allocation7 [shape = 'u8[1024]{0}', space=vmem, size = 0x400, scoped, tag = 'output window, operand 0, single buffered']
    %8 = vsyncpa [#allocation5], 0
    %s9 = scalar_lea.sflag [#allocation5], 1
    %10 = vsyncpa %s9, 0
    %11 = vsyncpa [#allocation6], 0
    loop: start=0, step=1, limit=4
    $region2: #{tpu_custom_call.1} parent=1 // loop_pre_header
      _
    $region3: #{tpu_custom_call.1} parent=1 // loop_header
      %s13 = sphi 0, %s17
      %p14 = scmp.ge.s32.totalorder %s13, 4
      %s20 = sphi 0, %s32
      %s21 = sphi 0, %s28
      %s22 = sphi 0, %s20
      %s23 = sphi 0, %s21
      %s24 = sphi 0, %s22
      %s25 = sphi 0, %s23
      %s37 = sphi 0, %s39
      %s40 = sphi 0, %s37
      %s41 = sphi 0, %s40
      %s57 = sphi 0, %s41
      %s61 = sphi 0, %s61
      %s63 = sphi 0, %s61
      %s64 = sphi 0, %s63
      %s78 = sphi 0, %s64
      %s82 = sphi 0, %s82
      %s84 = sphi 0, %s82
      %s85 = sphi 0, %s84
      %s99 = sphi 0, %s85
      %s105 = sphi 0, %s107
      %s108 = sphi 0, %s105
      %s109 = sphi 0, %s108
      %s125 = sphi 0, %s109
    $region4: #{tpu_custom_call.1} parent=1 // loop_header_branch
      %16 = sbr.rel (%p14) target = $region8
    $region5: #{tpu_custom_call.1} parent=1 // loop_body
      %s18 = ssub.s32 %s13, 1
      %s19 = ssub.s32 %s13, 2
      %s26 = sadd.s32 1, %s21
      %p27 = scmp.ge.s32.totalorder %s26, 2
      %s28 = scalar_select %p27, 0, %s26
      %s29 = sadd.s32 1, %s20
      %s30 = scalar_select %p27, %s29, %s20
      %p31 = scmp.ge.s32.totalorder %s30, 1
      %s32 = scalar_select %p31, 0, %s30
      %s33 = ssub.s32 %s20, %s32
      %s34 = ssub.s32 %s21, %s28
      %s35 = sor.u32 %s33, %s34
      %p36 = scmp.eq.s32.totalorder %s35, 0
      %s38 = sadd.s32 %s37, 1
      %s39 = scalar_select %p36, %s37, %s38
      %p42 = pneg %p36
      %p43 = scmp.eq.s32.totalorder %s13, 1
      %p44 = por %p42, %p43
      %p45 = scmp.ne.s32.totalorder %s37, %s40
      %p46 = scmp.eq.s32.totalorder %s13, 0
      %p47 = por %p45, %p46
      %p48 = scmp.ne.s32.totalorder %s37, %s40
      %p49 = scmp.eq.s32.totalorder %s18, 1
      %p50 = por %p48, %p49
      %p51 = scmp.ne.s32.totalorder %s40, %s41
      %p52 = scmp.eq.s32.totalorder %s18, 0
      %p53 = por %p51, %p52
      %p54 = scmp.ne.s32.totalorder %s40, %s41
      %p55 = scmp.eq.s32.totalorder %s19, 1
      %p56 = por %p54, %p55
      %p58 = scmp.ne.s32.totalorder %s41, %s57
      %p59 = scmp.eq.s32.totalorder %s19, 0
      %p60 = por %p58, %p59
      %s62 = sadd.s32 %s61, 1
      %p65 = scmp.eq.s32.totalorder %s13, 1
      %p66 = scmp.ne.s32.totalorder %s61, %s63
      %p67 = scmp.eq.s32.totalorder %s13, 0
      %p68 = por %p66, %p67
      %p69 = scmp.ne.s32.totalorder %s61, %s63
      %p70 = scmp.eq.s32.totalorder %s18, 1
      %p71 = por %p69, %p70
      %p72 = scmp.ne.s32.totalorder %s63, %s64
      %p73 = scmp.eq.s32.totalorder %s18, 0
      %p74 = por %p72, %p73
      %p75 = scmp.ne.s32.totalorder %s63, %s64
      %p76 = scmp.eq.s32.totalorder %s19, 1
      %p77 = por %p75, %p76
      %p79 = scmp.ne.s32.totalorder %s64, %s78
      %p80 = scmp.eq.s32.totalorder %s19, 0
      %p81 = por %p79, %p80
      %s83 = sadd.s32 %s82, 1
      %p86 = scmp.eq.s32.totalorder %s13, 1
      %p87 = scmp.ne.s32.totalorder %s82, %s84
      %p88 = scmp.eq.s32.totalorder %s13, 0
      %p89 = por %p87, %p88
      %p90 = scmp.ne.s32.totalorder %s82, %s84
      %p91 = scmp.eq.s32.totalorder %s18, 1
      %p92 = por %p90, %p91
      %p93 = scmp.ne.s32.totalorder %s84, %s85
      %p94 = scmp.eq.s32.totalorder %s18, 0
      %p95 = por %p93, %p94
      %p96 = scmp.ne.s32.totalorder %s84, %s85
      %p97 = scmp.eq.s32.totalorder %s19, 1
      %p98 = por %p96, %p97
      %p100 = scmp.ne.s32.totalorder %s85, %s99
      %p101 = scmp.eq.s32.totalorder %s19, 0
      %p102 = por %p100, %p101
      %s103 = ssub.s32 %s20, %s32
      %p104 = scmp.eq.s32.totalorder %s103, 0
      %s106 = sadd.s32 %s105, 1
      %s107 = scalar_select %p104, %s105, %s106
      %p110 = pneg %p104
      %p111 = scmp.eq.s32.totalorder %s13, 1
      %p112 = por %p110, %p111
      %p113 = scmp.ne.s32.totalorder %s105, %s108
      %p114 = scmp.eq.s32.totalorder %s13, 0
      %p115 = por %p113, %p114
      %p116 = scmp.ne.s32.totalorder %s105, %s108
      %p117 = scmp.eq.s32.totalorder %s18, 1
      %p118 = por %p116, %p117
      %p119 = scmp.ne.s32.totalorder %s108, %s109
      %p120 = scmp.eq.s32.totalorder %s18, 0
      %p121 = por %p119, %p120
      %p122 = scmp.ne.s32.totalorder %s108, %s109
      %p123 = scmp.eq.s32.totalorder %s19, 1
      %p124 = por %p122, %p123
      %p126 = scmp.ne.s32.totalorder %s109, %s125
      %p127 = scmp.eq.s32.totalorder %s19, 0
      %p128 = por %p126, %p127
      %p129 = scmp.le.s32.totalorder 1, %s13
      %p130 = scmp.lt.s32.totalorder %s13, 3
      %p131 = pnand %p129, %p130
      %p132 = pneg %p131
      // Predicated region
      $region9: #{tpu_custom_call.1} parent=5 // pred_check
        _
      $region10: #{tpu_custom_call.1} parent=5 // pred_check_branch
        %134 = sbr.rel (%p131) target = $region12
      $region11: #{tpu_custom_call.1} parent=5 // pred_region
        %s135 = ssub.s32 %s13, 1
        // Predicated region
        $region13: #{tpu_custom_call.1} parent=11 // pred_check
          %p136 = pneg %p74
        $region14: #{tpu_custom_call.1} parent=11 // pred_check_branch
          %138 = sbr.rel (%p136) target = $region16
        $region15: #{tpu_custom_call.1} parent=11 // pred_region
          _
        $region16: #{tpu_custom_call.1} parent=11 // pred_fallthru
          _
        // Predicated region
        $region17: #{tpu_custom_call.1} parent=11 // pred_check
          %p139 = pneg %p95
        $region18: #{tpu_custom_call.1} parent=11 // pred_check_branch
          %141 = sbr.rel (%p139) target = $region20
        $region19: #{tpu_custom_call.1} parent=11 // pred_region
          _
        $region20: #{tpu_custom_call.1} parent=11 // pred_fallthru
          _
      $region12: #{tpu_custom_call.1} parent=5 // pred_fallthru
        _
      %p142 = scmp.lt.s32.totalorder %s13, 2
      // Predicated region
      $region21: #{tpu_custom_call.1} parent=5 // pred_check
        %p143 = pneg %p142
      $region22: #{tpu_custom_call.1} parent=5 // pred_check_branch
        %145 = sbr.rel (%p143) target = $region24
      $region23: #{tpu_custom_call.1} parent=5 // pred_region
        // Predicated region
        $region25: #{tpu_custom_call.1} parent=23 // pred_check
          %p146 = pneg %p47
        $region26: #{tpu_custom_call.1} parent=23 // pred_check_branch
          %148 = sbr.rel (%p146) target = $region28
        $region27: #{tpu_custom_call.1} parent=23 // pred_region
          %s149 = sand.u32 %s37, 1
          %s150 = scalar_lea.sflag [#allocation5], %s149
          %s151 = sand.u32 %s37, 1
          %s152 = smul.addr %s151, 128
          %s153 = scalar_lea.vmem [#allocation4], %s152
          %s154 = smul.u32 2, %s20
          %s156 = ssub.s32 2048, 2048
          %157 = vsyncadd %s150, %s156
          %s158 = smul.addr %s154, 16
          %s159 = sadd.s32 %s21, %s158
          %s160 = smul.addr %s159, 128
          %s161 = scalar_lea.hbm %s0, %s160
          %s162 = sshll.u32 %s153, 4
          %s163 = int_to_ptr.vmem [resolvable:$true] %s162
          %168 = dma.hbm_to_vmem [thread:$0]  %s161, 2048, %s163, %s150, 256, 128, 8
        $region28: #{tpu_custom_call.1} parent=23 // pred_fallthru
          _
      $region24: #{tpu_custom_call.1} parent=5 // pred_fallthru
        _
      %p169 = scmp.le.s32.totalorder 1, %s13
      %p170 = scmp.lt.s32.totalorder %s13, 3
      %p171 = pnand %p169, %p170
      %p172 = pneg %p171
      // Predicated region
      $region29: #{tpu_custom_call.1} parent=5 // pred_check
        _
      $region30: #{tpu_custom_call.1} parent=5 // pred_check_branch
        %174 = sbr.rel (%p171) target = $region32
      $region31: #{tpu_custom_call.1} parent=5 // pred_region
        %s175 = ssub.s32 %s13, 1
        %s176 = sand.u32 %s40, 1
        %s177 = scalar_lea.sflag [#allocation5], %s176
        %s178 = sand.u32 %s40, 1
        %s179 = smul.addr %s178, 128
        %s180 = scalar_lea.vmem [#allocation4], %s179
        // Predicated region
        $region33: #{tpu_custom_call.1} parent=31 // pred_check
          %p181 = pneg %p53
        $region34: #{tpu_custom_call.1} parent=31 // pred_check_branch
          %183 = sbr.rel (%p181) target = $region36
        $region35: #{tpu_custom_call.1} parent=31 // pred_region
          %184 = dma.done %s177, 2048
        $region36: #{tpu_custom_call.1} parent=31 // pred_fallthru
          _
        %s185 = sand.u32 %s40, 1
        %s186 = scalar_lea.sflag [#allocation5], %s185
        %s187 = sand.u32 %s40, 1
        %s188 = smul.addr %s187, 128
        %s189 = scalar_lea.vmem [#allocation4], %s188
        %p190 = pneg %p53
        %p191 = pneg %p50
        %p192 = pneg %p74
        %p193 = pneg %p71
        %p194 = pneg %p95
        %p195 = pneg %p92
        %p196 = pneg %p121
        %p197 = pneg %p118
        %s198 = smul.u32 2, %s22
        %p199 = scmp.eq.s32.totalorder %s23, 0
        // Predicated region
        $region37: #{tpu_custom_call.1} parent=31 // pred_check
          %p200 = pneg %p199
        $region38: #{tpu_custom_call.1} parent=31 // pred_check_branch
          %202 = sbr.rel (%p200) target = $region40
        $region39: #{tpu_custom_call.1} parent=31 // pred_region
          %vm203 = vcmask 517120
          %204 = vst.msk [vmem:[#allocation2] sm:$0x3] %vm203, 0.0
          %205 = vst.msk [vmem:[#allocation3] sm:$0x3] %vm203, -inf
        $region40: #{tpu_custom_call.1} parent=31 // pred_fallthru
          _
        %v206 = vld [vmem:[%s180] sm:$0xff]
        %v207 = vld [vmem:[%s180 + $0x8] sm:$0xff]
        %v208 = vld [vmem:[%s180 + $0x10] sm:$0xff]
        %v209 = vld [vmem:[%s180 + $0x18] sm:$0xff]
        %v210 = vld [vmem:[%s180 + $0x20] sm:$0xff]
        %v211 = vld [vmem:[%s180 + $0x28] sm:$0xff]
        %v212 = vld [vmem:[%s180 + $0x30] sm:$0xff]
        %v213 = vld [vmem:[%s180 + $0x38] sm:$0xff]
        %v214 = vld [vmem:[%s180 + $0x40] sm:$0xff]
        %v215 = vld [vmem:[%s180 + $0x48] sm:$0xff]
        %v216 = vld [vmem:[%s180 + $0x50] sm:$0xff]
        %v217 = vld [vmem:[%s180 + $0x58] sm:$0xff]
        %v218 = vld [vmem:[%s180 + $0x60] sm:$0xff]
        %v219 = vld [vmem:[%s180 + $0x68] sm:$0xff]
        %v220 = vld [vmem:[%s180 + $0x70] sm:$0xff]
        %v221 = vld [vmem:[%s180 + $0x78] sm:$0xff]
        %v222 = vld [vmem:[#allocation2] sm:$0x3]
        %223 = vadd.xlane.f32.xlu0 %v206
        %v224 = vpop.xlane.xlu0 %223
        %225 = vadd.xlane.f32.xlu0 %v207
        %v226 = vpop.xlane.xlu0 %225
        %227 = vadd.xlane.f32.xlu0 %v208
        %v228 = vpop.xlane.xlu0 %227
        %229 = vadd.xlane.f32.xlu0 %v209
        %v230 = vpop.xlane.xlu0 %229
        %231 = vadd.xlane.f32.xlu0 %v210
        %v232 = vpop.xlane.xlu0 %231
        %233 = vadd.xlane.f32.xlu0 %v211
        %v234 = vpop.xlane.xlu0 %233
        %235 = vadd.xlane.f32.xlu0 %v212
        %v236 = vpop.xlane.xlu0 %235
        %237 = vadd.xlane.f32.xlu0 %v213
        %v238 = vpop.xlane.xlu0 %237
        %239 = vadd.xlane.f32.xlu0 %v214
        %v240 = vpop.xlane.xlu0 %239
        %241 = vadd.xlane.f32.xlu0 %v215
        %v242 = vpop.xlane.xlu0 %241
        %243 = vadd.xlane.f32.xlu0 %v216
        %v244 = vpop.xlane.xlu0 %243
        %245 = vadd.xlane.f32.xlu0 %v217
        %v246 = vpop.xlane.xlu0 %245
        %247 = vadd.xlane.f32.xlu0 %v218
        %v248 = vpop.xlane.xlu0 %247
        %249 = vadd.xlane.f32.xlu0 %v219
        %v250 = vpop.xlane.xlu0 %249
        %251 = vadd.xlane.f32.xlu0 %v220
        %v252 = vpop.xlane.xlu0 %251
        %253 = vadd.xlane.f32.xlu0 %v221
        %v254 = vpop.xlane.xlu0 %253
        %v271 = vlaneseq
        %v272 = vand.u32 %v271, 127
        %v273 = vlaneseq
        %v274 = vshrl.u32 %v273, 7
        %v275 = vsub.s32 %v272, %v274
        %v276 = vrot.slane %v224, %v275
        %v277 = vadd.s32 %v272, 4294967288
        %v278 = vlaneseq
        %v279 = vshrl.u32 %v278, 7
        %v280 = vsub.s32 %v277, %v279
        %v281 = vrot.slane %v226, %v280
        %vm282 = vcmask 130112
        %v283 = vsel %vm282, %v281, %v276
        %v284 = vadd.s32 %v272, 4294967280
        %v285 = vlaneseq
        %v286 = vshrl.u32 %v285, 7
        %v287 = vsub.s32 %v284, %v286
        %v288 = vrot.slane %v228, %v287
        %vm289 = vcmask 195712
        %v290 = vsel %vm289, %v288, %v283
        %v291 = vadd.s32 %v272, 4294967272
        %v292 = vlaneseq
        %v293 = vshrl.u32 %v292, 7
        %v294 = vsub.s32 %v291, %v293
        %v295 = vrot.slane %v230, %v294
        %vm296 = vcmask 261312
        %v297 = vsel %vm296, %v295, %v290
        %v298 = vadd.s32 %v272, 4294967264
        %v299 = vlaneseq
        %v300 = vshrl.u32 %v299, 7
        %v301 = vsub.s32 %v298, %v300
        %v302 = vrot.slane %v232, %v301
        %vm303 = vcmask 326912
        %v304 = vsel %vm303, %v302, %v297
        %v305 = vadd.s32 %v272, 4294967256
        %v306 = vlaneseq
        %v307 = vshrl.u32 %v306, 7
        %v308 = vsub.s32 %v305, %v307
        %v309 = vrot.slane %v234, %v308
        %vm310 = vcmask 392512
        %v311 = vsel %vm310, %v309, %v304
        %v312 = vadd.s32 %v272, 4294967248
        %v313 = vlaneseq
        %v314 = vshrl.u32 %v313, 7
        %v315 = vsub.s32 %v312, %v314
        %v316 = vrot.slane %v236, %v315
        %vm317 = vcmask 458112
        %v318 = vsel %vm317, %v316, %v311
        %v319 = vadd.s32 %v272, 4294967240
        %v320 = vlaneseq
        %v321 = vshrl.u32 %v320, 7
        %v322 = vsub.s32 %v319, %v321
        %v323 = vrot.slane %v238, %v322
        %vm324 = vcmask 523712
        %v325 = vsel %vm324, %v323, %v318
        %v326 = vlaneseq
        %v327 = vshrl.u32 %v326, 7
        %v328 = vsub.s32 %v272, %v327
        %v329 = vrot.slane %v240, %v328
        %v330 = vlaneseq
        %v331 = vshrl.u32 %v330, 7
        %v332 = vsub.s32 %v277, %v331
        %v333 = vrot.slane %v242, %v332
        %v334 = vsel %vm282, %v333, %v329
        %v335 = vlaneseq
        %v336 = vshrl.u32 %v335, 7
        %v337 = vsub.s32 %v284, %v336
        %v338 = vrot.slane %v244, %v337
        %v339 = vsel %vm289, %v338, %v334
        %v340 = vlaneseq
        %v341 = vshrl.u32 %v340, 7
        %v342 = vsub.s32 %v291, %v341
        %v343 = vrot.slane %v246, %v342
        %v344 = vsel %vm296, %v343, %v339
        %v345 = vlaneseq
        %v346 = vshrl.u32 %v345, 7
        %v347 = vsub.s32 %v298, %v346
        %v348 = vrot.slane %v248, %v347
        %v349 = vsel %vm303, %v348, %v344
        %v350 = vlaneseq
        %v351 = vshrl.u32 %v350, 7
        %v352 = vsub.s32 %v305, %v351
        %v353 = vrot.slane %v250, %v352
        %v354 = vsel %vm310, %v353, %v349
        %v355 = vlaneseq
        %v356 = vshrl.u32 %v355, 7
        %v357 = vsub.s32 %v312, %v356
        %v358 = vrot.slane %v252, %v357
        %v359 = vsel %vm317, %v358, %v354
        %v360 = vlaneseq
        %v361 = vshrl.u32 %v360, 7
        %v362 = vsub.s32 %v319, %v361
        %v363 = vrot.slane %v254, %v362
        %v364 = vsel %vm324, %v363, %v359
        %vm365 = vcmask 1041409
        %v366 = vsel %vm365, %v364, %v325
        %v368 = vadd.f32 %v222, %v366
        %vm369 = vcmask 517120
        %370 = vst.msk [vmem:[#allocation2] sm:$0x3] %vm369, %v368
        %v371 = vld [vmem:[#allocation3] sm:$0x3]
        %372 = vmax.xlane.f32.xlu0 %v206
        %v373 = vpop.xlane.xlu0 %372
        %374 = vmax.xlane.f32.xlu0 %v207
        %v375 = vpop.xlane.xlu0 %374
        %376 = vmax.xlane.f32.xlu0 %v208
        %v377 = vpop.xlane.xlu0 %376
        %378 = vmax.xlane.f32.xlu0 %v209
        %v379 = vpop.xlane.xlu0 %378
        %380 = vmax.xlane.f32.xlu0 %v210
        %v381 = vpop.xlane.xlu0 %380
        %382 = vmax.xlane.f32.xlu0 %v211
        %v383 = vpop.xlane.xlu0 %382
        %384 = vmax.xlane.f32.xlu0 %v212
        %v385 = vpop.xlane.xlu0 %384
        %386 = vmax.xlane.f32.xlu0 %v213
        %v387 = vpop.xlane.xlu0 %386
        %388 = vmax.xlane.f32.xlu0 %v214
        %v389 = vpop.xlane.xlu0 %388
        %390 = vmax.xlane.f32.xlu0 %v215
        %v391 = vpop.xlane.xlu0 %390
        %392 = vmax.xlane.f32.xlu0 %v216
        %v393 = vpop.xlane.xlu0 %392
        %394 = vmax.xlane.f32.xlu0 %v217
        %v395 = vpop.xlane.xlu0 %394
        %396 = vmax.xlane.f32.xlu0 %v218
        %v397 = vpop.xlane.xlu0 %396
        %398 = vmax.xlane.f32.xlu0 %v219
        %v399 = vpop.xlane.xlu0 %398
        %400 = vmax.xlane.f32.xlu0 %v220
        %v401 = vpop.xlane.xlu0 %400
        %402 = vmax.xlane.f32.xlu0 %v221
        %v403 = vpop.xlane.xlu0 %402
        %v420 = vlaneseq
        %v421 = vshrl.u32 %v420, 7
        %v422 = vsub.s32 %v272, %v421
        %v423 = vrot.slane %v373, %v422
        %v424 = vlaneseq
        %v425 = vshrl.u32 %v424, 7
        %v426 = vsub.s32 %v277, %v425
        %v427 = vrot.slane %v375, %v426
        %v428 = vsel %vm282, %v427, %v423
        %v429 = vlaneseq
        %v430 = vshrl.u32 %v429, 7
        %v431 = vsub.s32 %v284, %v430
        %v432 = vrot.slane %v377, %v431
        %v433 = vsel %vm289, %v432, %v428
        %v434 = vlaneseq
        %v435 = vshrl.u32 %v434, 7
        %v436 = vsub.s32 %v291, %v435
        %v437 = vrot.slane %v379, %v436
        %v438 = vsel %vm296, %v437, %v433
        %v439 = vlaneseq
        %v440 = vshrl.u32 %v439, 7
        %v441 = vsub.s32 %v298, %v440
        %v442 = vrot.slane %v381, %v441
        %v443 = vsel %vm303, %v442, %v438
        %v444 = vlaneseq
        %v445 = vshrl.u32 %v444, 7
        %v446 = vsub.s32 %v305, %v445
        %v447 = vrot.slane %v383, %v446
        %v448 = vsel %vm310, %v447, %v443
        %v449 = vlaneseq
        %v450 = vshrl.u32 %v449, 7
        %v451 = vsub.s32 %v312, %v450
        %v452 = vrot.slane %v385, %v451
        %v453 = vsel %vm317, %v452, %v448
        %v454 = vlaneseq
        %v455 = vshrl.u32 %v454, 7
        %v456 = vsub.s32 %v319, %v455
        %v457 = vrot.slane %v387, %v456
        %v458 = vsel %vm324, %v457, %v453
        %v459 = vlaneseq
        %v460 = vshrl.u32 %v459, 7
        %v461 = vsub.s32 %v272, %v460
        %v462 = vrot.slane %v389, %v461
        %v463 = vlaneseq
        %v464 = vshrl.u32 %v463, 7
        %v465 = vsub.s32 %v277, %v464
        %v466 = vrot.slane %v391, %v465
        %v467 = vsel %vm282, %v466, %v462
        %v468 = vlaneseq
        %v469 = vshrl.u32 %v468, 7
        %v470 = vsub.s32 %v284, %v469
        %v471 = vrot.slane %v393, %v470
        %v472 = vsel %vm289, %v471, %v467
        %v473 = vlaneseq
        %v474 = vshrl.u32 %v473, 7
        %v475 = vsub.s32 %v291, %v474
        %v476 = vrot.slane %v395, %v475
        %v477 = vsel %vm296, %v476, %v472
        %v478 = vlaneseq
        %v479 = vshrl.u32 %v478, 7
        %v480 = vsub.s32 %v298, %v479
        %v481 = vrot.slane %v397, %v480
        %v482 = vsel %vm303, %v481, %v477
        %v483 = vlaneseq
        %v484 = vshrl.u32 %v483, 7
        %v485 = vsub.s32 %v305, %v484
        %v486 = vrot.slane %v399, %v485
        %v487 = vsel %vm310, %v486, %v482
        %v488 = vlaneseq
        %v489 = vshrl.u32 %v488, 7
        %v490 = vsub.s32 %v312, %v489
        %v491 = vrot.slane %v401, %v490
        %v492 = vsel %vm317, %v491, %v487
        %v493 = vlaneseq
        %v494 = vshrl.u32 %v493, 7
        %v495 = vsub.s32 %v319, %v494
        %v496 = vrot.slane %v403, %v495
        %v497 = vsel %vm324, %v496, %v492
        %v498 = vsel %vm365, %v497, %v458
        %v500 = vmax.f32 %v371, %v498
        %501 = vst.msk [vmem:[#allocation3] sm:$0x3] %vm369, %v500
        %p502 = scmp.eq.s32.totalorder %s23, 1
        // Predicated region
        $region41: #{tpu_custom_call.1} parent=31 // pred_check
          %p503 = pneg %p502
        $region42: #{tpu_custom_call.1} parent=31 // pred_check_branch
          %505 = sbr.rel (%p503) target = $region44
        $region43: #{tpu_custom_call.1} parent=31 // pred_region
          %v506 = vld [vmem:[#allocation2] sm:$0x3]
          %v507 = vmul.f32 %v506, 0.00390625
          %v508 = vld [vmem:[#allocation3] sm:$0x3]
          %v510 = vrot.slane %v508, 6
          %vm512 = vcmask 1041408
          %v513 = vsel %vm512, %v507, %v510
          %v514 = vld [vmem:[%s1] sm:$0xff]
          %v515 = vld [vmem:[%s1 + $0x8] sm:$0xff]
          %v516 = vld [vmem:[%s1 + $0x10] sm:$0xff]
          %v517 = vld [vmem:[%s1 + $0x18] sm:$0xff]
          %v518 = vld [vmem:[%s1 + $0x20] sm:$0xff]
          %v519 = vld [vmem:[%s1 + $0x28] sm:$0xff]
          %v520 = vld [vmem:[%s1 + $0x30] sm:$0xff]
          %v521 = vld [vmem:[%s1 + $0x38] sm:$0xff]
          %vm522 = vcmask 523264
          %v524 = vsel %vm522, %v513, 0
          %526 = vmatprep.subr.mxu0 0.0
          %527 = vmatpush1.msra.mxu0 0.0
          %528 = vmatprep.subr.mxu0 0.0
          %529 = vmatpush1.msra.mxu0 0.0
          %530 = vmatprep.subr.mxu0 0.0
          %531 = vmatpush1.msra.mxu0 0.0
          %532 = vmatprep.subr.mxu0 0.0
          %533 = vmatpush1.msra.mxu0 0.0
          %534 = vmatprep.subr.mxu0 0.0
          %535 = vmatpush1.msra.mxu0 0.0
          %536 = vmatprep.subr.mxu0 0.0
          %537 = vmatpush1.msra.mxu0 0.0
          %538 = vmatprep.subr.mxu0 0.0
          %539 = vmatpush1.msra.mxu0 0.0
          %540 = vmatprep.subr.mxu0 0.0
          %541 = vmatpush1.msra.mxu0 0.0
          %542 = vmatprep.subr.mxu0 0.0
          %543 = vmatpush1.msra.mxu0 %v521
          %544 = vmatprep.subr.mxu0 0.0
          %545 = vmatpush1.msra.mxu0 %v520
          %546 = vmatprep.subr.mxu0 0.0
          %547 = vmatpush1.msra.mxu0 %v519
          %548 = vmatprep.subr.mxu0 0.0
          %549 = vmatpush1.msra.mxu0 %v518
          %550 = vmatprep.subr.mxu0 0.0
          %551 = vmatpush1.msra.mxu0 %v517
          %552 = vmatprep.subr.mxu0 0.0
          %553 = vmatpush1.msra.mxu0 %v516
          %554 = vmatprep.subr.mxu0 0.0
          %555 = vmatpush1.msra.mxu0 %v515
          %556 = vmatprep.subr.mxu0 0.0
          %557 = vmatpush1.msra.mxu0 %v514
          %558 = vmatprep.subr.mxu0 0.0
          %559 = vmatpush2.msra.mxu0 0.0
          %560 = vmatprep.subr.mxu0 0.0
          %561 = vmatpush2.msra.mxu0 0.0
          %562 = vmatprep.subr.mxu0 0.0
          %563 = vmatpush2.msra.mxu0 0.0
          %564 = vmatprep.subr.mxu0 0.0
          %565 = vmatpush2.msra.mxu0 0.0
          %566 = vmatprep.subr.mxu0 0.0
          %567 = vmatpush2.msra.mxu0 0.0
          %568 = vmatprep.subr.mxu0 0.0
          %569 = vmatpush2.msra.mxu0 0.0
          %570 = vmatprep.subr.mxu0 0.0
          %571 = vmatpush2.msra.mxu0 0.0
          %572 = vmatprep.subr.mxu0 0.0
          %573 = vmatpush2.msra.mxu0 0.0
          %574 = vmatprep.subr.mxu0 0.0
          %575 = vmatpush2.msra.mxu0 0.0
          %576 = vmatprep.subr.mxu0 0.0
          %577 = vmatpush2.msra.mxu0 0.0
          %578 = vmatprep.subr.mxu0 0.0
          %579 = vmatpush2.msra.mxu0 0.0
          %580 = vmatprep.subr.mxu0 0.0
          %581 = vmatpush2.msra.mxu0 0.0
          %582 = vmatprep.subr.mxu0 0.0
          %583 = vmatpush2.msra.mxu0 0.0
          %584 = vmatprep.subr.mxu0 0.0
          %585 = vmatpush2.msra.mxu0 0.0
          %586 = vmatprep.subr.mxu0 0.0
          %587 = vmatpush2.msra.mxu0 0.0
          %588 = vmatprep.subr.mxu0 0.0
          %589 = vmatpush2.msra.mxu0 0.0
          %590 = vmatprep.mubr.f32.mxu0 0.0
          %591 = vmatmul.mubr.f32.gmra.mxu0 %v524
          %v592 = vpop.f32.mrf.mxu0
          %v593 = vadd.f32 0.0, %v592
          %v594 = vpop.f32.mrf.mxu0
          %595 = vdwg.mxu0
          %v596 = vmax.f32 %v593, 0.0
          %v597 = vld [vmem:[%s2] sm:$0xf]
          %vm598 = vcmask 31744
          %v600 = vsel %vm598, %v596, 0
          %vm602 = vcmask 1043456
          %v604 = vsel %vm602, %v597, 0
          %606 = vmatprep.subr.mxu0 0.0
          %607 = vmatpush1.msra.mxu0 0.0
          %608 = vmatprep.subr.mxu0 0.0
          %609 = vmatpush1.msra.mxu0 0.0
          %610 = vmatprep.subr.mxu0 0.0
          %611 = vmatpush1.msra.mxu0 0.0
          %612 = vmatprep.subr.mxu0 0.0
          %613 = vmatpush1.msra.mxu0 0.0
          %614 = vmatprep.subr.mxu0 0.0
          %615 = vmatpush1.msra.mxu0 0.0
          %616 = vmatprep.subr.mxu0 0.0
          %617 = vmatpush1.msra.mxu0 0.0
          %618 = vmatprep.subr.mxu0 0.0
          %619 = vmatpush1.msra.mxu0 0.0
          %620 = vmatprep.subr.mxu0 0.0
          %621 = vmatpush1.msra.mxu0 0.0
          %622 = vmatprep.subr.mxu0 0.0
          %623 = vmatpush1.msra.mxu0 0.0
          %624 = vmatprep.subr.mxu0 0.0
          %625 = vmatpush1.msra.mxu0 0.0
          %626 = vmatprep.subr.mxu0 0.0
          %627 = vmatpush1.msra.mxu0 0.0
          %628 = vmatprep.subr.mxu0 0.0
          %629 = vmatpush1.msra.mxu0 0.0
          %630 = vmatprep.subr.mxu0 0.0
          %631 = vmatpush1.msra.mxu0 0.0
          %632 = vmatprep.subr.mxu0 0.0
          %633 = vmatpush1.msra.mxu0 0.0
          %634 = vmatprep.subr.mxu0 0.0
          %635 = vmatpush1.msra.mxu0 0.0
          %636 = vmatprep.subr.mxu0 0.0
          %637 = vmatpush1.msra.mxu0 %v604
          %638 = vmatprep.subr.mxu0 0.0
          %639 = vmatpush2.msra.mxu0 0.0
          %640 = vmatprep.subr.mxu0 0.0
          %641 = vmatpush2.msra.mxu0 0.0
          %642 = vmatprep.subr.mxu0 0.0
          %643 = vmatpush2.msra.mxu0 0.0
          %644 = vmatprep.subr.mxu0 0.0
          %645 = vmatpush2.msra.mxu0 0.0
          %646 = vmatprep.subr.mxu0 0.0
          %647 = vmatpush2.msra.mxu0 0.0
          %648 = vmatprep.subr.mxu0 0.0
          %649 = vmatpush2.msra.mxu0 0.0
          %650 = vmatprep.subr.mxu0 0.0
          %651 = vmatpush2.msra.mxu0 0.0
          %652 = vmatprep.subr.mxu0 0.0
          %653 = vmatpush2.msra.mxu0 0.0
          %654 = vmatprep.subr.mxu0 0.0
          %655 = vmatpush2.msra.mxu0 0.0
          %656 = vmatprep.subr.mxu0 0.0
          %657 = vmatpush2.msra.mxu0 0.0
          %658 = vmatprep.subr.mxu0 0.0
          %659 = vmatpush2.msra.mxu0 0.0
          %660 = vmatprep.subr.mxu0 0.0
          %661 = vmatpush2.msra.mxu0 0.0
          %662 = vmatprep.subr.mxu0 0.0
          %663 = vmatpush2.msra.mxu0 0.0
          %664 = vmatprep.subr.mxu0 0.0
          %665 = vmatpush2.msra.mxu0 0.0
          %666 = vmatprep.subr.mxu0 0.0
          %667 = vmatpush2.msra.mxu0 0.0
          %668 = vmatprep.subr.mxu0 0.0
          %669 = vmatpush2.msra.mxu0 0.0
          %670 = vmatprep.mubr.f32.mxu0 0.0
          %671 = vmatmul.mubr.f32.gmra.mxu0 %v600
          %v672 = vpop.f32.mrf.mxu0
          %v673 = vadd.f32 0.0, %v672
          %v674 = vpop.f32.mrf.mxu0
          %675 = vdwg.mxu0
          %v677 = vrot.slane %v673, 2
          %v679 = vadd.f32 %v673, %v677
          %v680 = vxor.u32 %v679, 2147483648
          %v681 = vmul.f32 %v680, 1.442695
          %v682 = vpow.pop %v681
          %v683 = vadd.f32 %v682, 1.0
          %v684 = vrcp.pop %v683
          %v685 = vmul.f32 1.0, %v684
          %686 = vst.msk [vmem:[#allocation7] sm:$0x3] %vm369, %v685
        $region44: #{tpu_custom_call.1} parent=31 // pred_fallthru
          _
        // Predicated region
        $region45: #{tpu_custom_call.1} parent=31 // pred_check
          %p687 = pneg %p118
        $region46: #{tpu_custom_call.1} parent=31 // pred_check_branch
          %689 = sbr.rel (%p687) target = $region48
        $region47: #{tpu_custom_call.1} parent=31 // pred_region
          %s691 = ssub.s32 32, 32
          %692 = vsyncadd [#allocation6], %s691
          %s693 = smul.addr %s22, 32
          %s694 = scalar_lea.hbm %s3, %s693
          %s696 = sshll.u32 [#allocation7], 4
          %s697 = int_to_ptr.vmem [resolvable:$true] %s696
          %699 = dma.vmem_to_hbm [thread:$0]  %s697, 32, %s694, [#allocation6]
        $region48: #{tpu_custom_call.1} parent=31 // pred_fallthru
          _
        // Predicated region
        $region49: #{tpu_custom_call.1} parent=31 // pred_check
          %p700 = pneg %p118
        $region50: #{tpu_custom_call.1} parent=31 // pred_check_branch
          %702 = sbr.rel (%p700) target = $region52
        $region51: #{tpu_custom_call.1} parent=31 // pred_region
          %703 = dma.done [#allocation6], 32
        $region52: #{tpu_custom_call.1} parent=31 // pred_fallthru
          _
      $region32: #{tpu_custom_call.1} parent=5 // pred_fallthru
        _
      %p704 = scmp.le.s32.totalorder 2, %s13
      // Predicated region
      $region53: #{tpu_custom_call.1} parent=5 // pred_check
        %p705 = pneg %p704
      $region54: #{tpu_custom_call.1} parent=5 // pred_check_branch
        %707 = sbr.rel (%p705) target = $region56
      $region55: #{tpu_custom_call.1} parent=5 // pred_region
        %s708 = ssub.s32 %s13, 2
      $region56: #{tpu_custom_call.1} parent=5 // pred_fallthru
        _
    $region6: #{tpu_custom_call.1} parent=1 // loop_footer
      %s17 = sadd.s32 1, %s13
    $region7: #{tpu_custom_call.1} parent=1 // loop_footer_branch
      %12 = sbr.rel target = $region3
    $region8: #{tpu_custom_call.1} parent=1 // loop_exit
      _
    %709 = vsyncpa [#allocation5], 1
    %s710 = scalar_lea.sflag [#allocation5], 1
    %711 = vsyncpa %s710, 1
    %712 = vsyncpa [#allocation6], 1
    %s713 = scalar_lea.sflag [#allocation6], 1
    %714 = vsyncpa %s713, 1

</llo_original>
